<compile_context>
chip_gen: v7x
topology: tpu7x:2x2x1
jax: 0.10.0
libtpu: 0.0.40
codegen_flags: <defaults>
</compile_context>

<pallas_src>
import numpy as np
import jax
import jax.numpy as jnp
from jax.experimental import pallas as pl
from jax.experimental.pallas import tpu as pltpu


# ----------------------------- config -------------------------------------
class Config:
    sr = 16000
    n_fft = 256
    win_length = 256
    hop_length = 64
    f_min = 0.0
    f_max = 8000.0
    n_mels = 32
    power = 1.0   # magnitude spectrogram (|STFT|)


def _ceil_div(a, b):
    return -(-a // b)


def _round_up(a, b):
    return _ceil_div(a, b) * b


# ------------------- deterministic parameter construction -----------------
def _hz_to_mel_slaney(f):
    f = float(f)
    f_sp = 200.0 / 3.0
    min_log_hz = 1000.0
    min_log_mel = min_log_hz / f_sp
    logstep = np.log(6.4) / 27.0
    if f >= min_log_hz:
        return min_log_mel + np.log(f / min_log_hz) / logstep
    return f / f_sp


def _mel_to_hz_slaney(m):
    m = np.asarray(m, dtype=np.float64)
    f_sp = 200.0 / 3.0
    min_log_hz = 1000.0
    min_log_mel = min_log_hz / f_sp
    logstep = np.log(6.4) / 27.0
    freqs = f_sp * m
    return np.where(m >= min_log_mel,
                    min_log_hz * np.exp(logstep * (m - min_log_mel)),
                    freqs)


def librosa_mel_basis(sr, n_fft, n_mels, fmin, fmax):
    """Reimplementation of librosa.filters.mel (htk=False, norm='slaney')."""
    n_freqs = n_fft // 2 + 1
    fftfreqs = np.linspace(0.0, sr / 2.0, n_freqs, dtype=np.float64)
    mel_pts = np.linspace(_hz_to_mel_slaney(fmin), _hz_to_mel_slaney(fmax), n_mels + 2)
    mel_f = _mel_to_hz_slaney(mel_pts)                       # [n_mels + 2]
    fdiff = np.diff(mel_f)                                   # [n_mels + 1]
    ramps = mel_f[:, None] - fftfreqs[None, :]               # [n_mels + 2, n_freqs]
    lower = -ramps[:-2] / fdiff[:-1, None]
    upper = ramps[2:] / fdiff[1:, None]
    weights = np.maximum(0.0, np.minimum(lower, upper))      # [n_mels, n_freqs]
    enorm = 2.0 / (mel_f[2:n_mels + 2] - mel_f[:n_mels])     # slaney norm
    weights = weights * enorm[:, None]
    return weights.astype(np.float32)                        # [n_mels, n_freqs]


def make_fused_dft(n_fft, win_length, n_freqs):
    """Hann (periodic) window folded into a fused [cos | -sin] real-DFT matrix
    of shape [n_fft, 2 * n_freqs]."""
    n = np.arange(win_length, dtype=np.float64)
    hann = 0.5 * (1.0 - np.cos(2.0 * np.pi * n / win_length))
    window = np.zeros(n_fft, dtype=np.float64)
    off = (n_fft - win_length) // 2
    window[off:off + win_length] = hann

    t = np.arange(n_fft, dtype=np.float64)[:, None]          # sample index
    f = np.arange(n_freqs, dtype=np.float64)[None, :]        # frequency bin
    ang = 2.0 * np.pi * t * f / n_fft
    cos_w = window[:, None] * np.cos(ang)
    sin_w = -window[:, None] * np.sin(ang)   # conjugate DFT convention (magnitude unaffected)
    return np.concatenate([cos_w, sin_w], axis=1).astype(np.float32)   # [n_fft, 2*n_freqs]


# ----------------------------- Pallas wrapper -------------------------------
def mel_spectrogram(audio, cfg: Config):
    """audio: [B, T] float32  ->  log-mel: [B, n_mels, 1 + T // hop]"""
    B, T = audio.shape
    n_fft = int(cfg.n_fft)
    hop = int(cfg.hop_length)
    n_mels = int(cfg.n_mels)
    power = float(cfg.power)

    assert n_fft % hop == 0, "kernel assumes n_fft is a multiple of hop_length"
    R = n_fft // hop                      # chunks per frame (4 here)
    n_freqs = n_fft // 2                  # Nyquist bin dropped (mel weight is exactly 0)
    assert n_freqs % 128 == 0, "n_fft//2 must be lane-aligned"

    # ---- deterministic weights (numpy) ----
    wdft_np = make_fused_dft(n_fft, int(cfg.win_length), n_freqs)            # [n_fft, 2*n_freqs]
    mel_full = librosa_mel_basis(cfg.sr, n_fft, n_mels, cfg.f_min, cfg.f_max)  # [n_mels, n_fft//2+1]
    # dropping the Nyquist bin must be lossless
    assert np.all(mel_full[:, n_freqs:] == 0.0), "Nyquist-bin mel weight is nonzero"
    n_mels_pad = _round_up(n_mels, 128)                                      # lane-dense output
    melfb_np = np.zeros((n_freqs, n_mels_pad), np.float32)
    melfb_np[:, :n_mels] = mel_full[:, :n_freqs].T
    wdft = jnp.asarray(wdft_np, dtype=jnp.bfloat16)
    melfb = jnp.asarray(melfb_np, dtype=jnp.bfloat16)

    # ---- framing metadata ----
    pad = n_fft // 2
    n_frames = 1 + T // hop
    TM = min(256, _round_up(n_frames, 8))           # frames per grid step
    n_tiles = _ceil_div(n_frames, TM)
    n_frames_pad = n_tiles * TM
    halo = _round_up(R - 1, 8)                      # extra chunk rows per tile (>= R-1)

    # reflect-pad (torch.stft center=True), then zero-pad so every tile window exists
    padded = jnp.pad(audio.astype(jnp.float32), ((0, 0), (pad, pad)), mode="reflect")
    n_chunks = n_frames_pad + halo
    extra = n_chunks * hop - padded.shape[1]
    padded = jnp.pad(padded, ((0, 0), (0, extra)))
    chunks = padded.reshape(B, n_chunks, hop)       # hop-sized chunks, no frame duplication

    # per-tile chunk windows with a small halo (~(halo/TM) duplication vs. R x for full framing)
    win_idx = jnp.arange(n_tiles)[:, None] * TM + jnp.arange(TM + halo)[None, :]
    tile_chunks = chunks[:, win_idx, :].reshape(B * n_tiles, TM + halo, hop)

    G = B * n_tiles
    M_pad = G * TM

    def kernel(chunks_ref, wdft_ref, melfb_ref, out_ref, fr_ref):
        # assemble the (TM, n_fft) frame tile in VMEM from R shifted chunk slices:
        # frame f = [chunk f, chunk f+1, ..., chunk f+R-1]
        for p in range(R):
            fr_ref[:, p * hop:(p + 1) * hop] = chunks_ref[0, p:p + TM, :]
        frames = fr_ref[...].astype(jnp.bfloat16)                    # (TM, n_fft)
        y = jnp.dot(frames, wdft_ref[...],
                    preferred_element_type=jnp.float32)              # (TM, 2*n_freqs)
        re = y[:, :n_freqs]
        im = y[:, n_freqs:]
        psum = re * re + im * im                                     # |STFT|^2, f32
        if power == 2.0:
            spec = psum
        elif power == 1.0:
            spec = jnp.sqrt(psum)                                    # magnitude
        else:
            spec = jnp.power(psum, power * 0.5)
        mel = jnp.dot(spec.astype(jnp.bfloat16), melfb_ref[...],
                      preferred_element_type=jnp.float32)            # (TM, n_mels_pad)
        out_ref[...] = jnp.log(jnp.maximum(mel, 1e-5))               # clamp(1e-5).log()

    cost = pl.CostEstimate(
        flops=2 * M_pad * n_fft * (2 * n_freqs) + 2 * M_pad * n_freqs * n_mels_pad,
        transcendentals=M_pad * (n_freqs + n_mels_pad),
        bytes_accessed=(G * (TM + halo) * hop * 4 + wdft_np.size * 2
                        + melfb_np.size * 2 + M_pad * n_mels_pad * 4),
    )

    out = pl.pallas_call(
        kernel,
        out_shape=jax.ShapeDtypeStruct((M_pad, n_mels_pad), jnp.float32),
        grid=(G,),
        in_specs=[
            pl.BlockSpec((1, TM + halo, hop), lambda g: (g, 0, 0)),       # audio chunks
            pl.BlockSpec((n_fft, 2 * n_freqs), lambda g: (0, 0)),         # fused DFT (resident)
            pl.BlockSpec((n_freqs, n_mels_pad), lambda g: (0, 0)),        # mel basis (resident)
        ],
        out_specs=pl.BlockSpec((TM, n_mels_pad), lambda g: (g, 0)),
        scratch_shapes=[pltpu.VMEM((TM, n_fft), jnp.float32)],
        compiler_params=pltpu.CompilerParams(dimension_semantics=("parallel",)),
        cost_estimate=cost,
    )(tile_chunks, wdft, melfb)

    # [M_pad, n_mels_pad] -> [B, n_frames, n_mels] -> [B, n_mels, n_frames]
    out = out.reshape(B, n_frames_pad, n_mels_pad)[:, :n_frames, :n_mels]
    return out.transpose(0, 2, 1)


# --------------------------------- main ------------------------------------
if __name__ == "__main__":
    cfg = Config()
    key = jax.random.PRNGKey(0)
    B, T = 2, 1024                                   # small: 2 waveforms, 1024 samples
    audio = jax.random.normal(key, (B, T), dtype=jnp.float32)

    logmel = mel_spectrogram(audio, cfg)
    logmel = jax.block_until_ready(logmel)

    expected_frames = 1 + T // cfg.hop_length
    assert logmel.shape == (B, cfg.n_mels, expected_frames), logmel.shape
    assert bool(jnp.all(jnp.isfinite(logmel)))
    print("KERNEL_OK")
</pallas_src>

<mosaic_0001>
module attributes {stable_mosaic.version = 11 : i64} {
  func.func @kernel(%arg0: i32, %arg1: memref<1x32x64xf32, #tpu.memory_space<vmem>>, %arg2: memref<256x256xbf16, #tpu.memory_space<vmem>>, %arg3: memref<128x128xbf16, #tpu.memory_space<vmem>>, %arg4: memref<24x128xf32, #tpu.memory_space<vmem>>, %arg5: memref<24x256xf32, #tpu.memory_space<vmem>>) attributes {dimension_semantics = [#tpu.dimension_semantics<parallel>], iteration_bounds = array<i64: 2>, scalar_prefetch = 0 : i64, scratch_operands = 1 : i64, tpu.core_type = #tpu.core_type<tc>, window_params = [{transform_indices = @transform_0, window_bounds = array<i64: 1, 32, 64>}, {pipeline_mode = #tpu.pipeline_mode<synchronous>, transform_indices = @transform_1, window_bounds = array<i64: 256, 256>}, {pipeline_mode = #tpu.pipeline_mode<synchronous>, transform_indices = @transform_2, window_bounds = array<i64: 128, 128>}, {transform_indices = @transform_3, window_bounds = array<i64: 24, 128>}]} {
    %c0 = arith.constant 0 : index
    %c0_0 = arith.constant 0 : index
    %c0_1 = arith.constant 0 : index
    %0 = vector.load %arg1[%c0, %c0_0, %c0_1] : memref<1x32x64xf32, #tpu.memory_space<vmem>>, vector<1x24x64xf32>
    %1 = vector.shape_cast %0 : vector<1x24x64xf32> to vector<24x64xf32>
    %c0_2 = arith.constant 0 : index
    %c0_3 = arith.constant 0 : index
    %2 = vector.load %arg5[%c0_2, %c0_3] : memref<24x256xf32, #tpu.memory_space<vmem>>, vector<24x64xf32>
    tpu.vector_store %arg5[%c0_2, %c0_3], %1 {strides = array<i32>} : memref<24x256xf32, #tpu.memory_space<vmem>>, vector<24x64xf32>,
    %c0_4 = arith.constant 0 : index
    %c1 = arith.constant 1 : index
    %c0_5 = arith.constant 0 : index
    %3 = vector.load %arg1[%c0_4, %c1, %c0_5] : memref<1x32x64xf32, #tpu.memory_space<vmem>>, vector<1x24x64xf32>
    %4 = vector.shape_cast %3 : vector<1x24x64xf32> to vector<24x64xf32>
    %c0_6 = arith.constant 0 : index
    %c64 = arith.constant 64 : index
    %5 = vector.load %arg5[%c0_6, %c64] : memref<24x256xf32, #tpu.memory_space<vmem>>, vector<24x64xf32>
    tpu.vector_store %arg5[%c0_6, %c64], %4 {strides = array<i32>} : memref<24x256xf32, #tpu.memory_space<vmem>>, vector<24x64xf32>,
    %c0_7 = arith.constant 0 : index
    %c2 = arith.constant 2 : index
    %c0_8 = arith.constant 0 : index
    %6 = vector.load %arg1[%c0_7, %c2, %c0_8] : memref<1x32x64xf32, #tpu.memory_space<vmem>>, vector<1x24x64xf32>
    %7 = vector.shape_cast %6 : vector<1x24x64xf32> to vector<24x64xf32>
    %c0_9 = arith.constant 0 : index
    %c128 = arith.constant 128 : index
    %8 = vector.load %arg5[%c0_9, %c128] : memref<24x256xf32, #tpu.memory_space<vmem>>, vector<24x64xf32>
    tpu.vector_store %arg5[%c0_9, %c128], %7 {strides = array<i32>} : memref<24x256xf32, #tpu.memory_space<vmem>>, vector<24x64xf32>,
    %c0_10 = arith.constant 0 : index
    %c3 = arith.constant 3 : index
    %c0_11 = arith.constant 0 : index
    %9 = vector.load %arg1[%c0_10, %c3, %c0_11] : memref<1x32x64xf32, #tpu.memory_space<vmem>>, vector<1x24x64xf32>
    %10 = vector.shape_cast %9 : vector<1x24x64xf32> to vector<24x64xf32>
    %c0_12 = arith.constant 0 : index
    %c192 = arith.constant 192 : index
    %11 = vector.load %arg5[%c0_12, %c192] : memref<24x256xf32, #tpu.memory_space<vmem>>, vector<24x64xf32>
    tpu.vector_store %arg5[%c0_12, %c192], %10 {strides = array<i32>} : memref<24x256xf32, #tpu.memory_space<vmem>>, vector<24x64xf32>,
    %c0_13 = arith.constant 0 : index
    %c0_14 = arith.constant 0 : index
    %12 = vector.load %arg5[%c0_13, %c0_14] : memref<24x256xf32, #tpu.memory_space<vmem>>, vector<24x256xf32>
    %13 = arith.truncf %12 : vector<24x256xf32> to vector<24x256xbf16>
    %c0_15 = arith.constant 0 : index
    %c0_16 = arith.constant 0 : index
    %14 = vector.load %arg2[%c0_15, %c0_16] : memref<256x256xbf16, #tpu.memory_space<vmem>>, vector<256x256xbf16>
    %cst = arith.constant dense<0.000000e+00> : vector<24x256xf32>
    %15 = tpu.matmul %13, %14, %cst {dimension_numbers = #tpu.dot_dimension_numbers<[1], [0], [0], [1], [0, 0, 1, 1], [], []>} : vector<24x256xbf16>, vector<256x256xbf16>, vector<24x256xf32> -> vector<24x256xf32>
    %16 = vector.extract_strided_slice %15 {offsets = [0, 0], sizes = [24, 128], strides = [1, 1]} : vector<24x256xf32> to vector<24x128xf32>
    %17 = vector.extract_strided_slice %15 {offsets = [0, 128], sizes = [24, 128], strides = [1, 1]} : vector<24x256xf32> to vector<24x128xf32>
    %18 = arith.mulf %16, %16 : vector<24x128xf32>
    %19 = arith.mulf %17, %17 : vector<24x128xf32>
    %20 = arith.addf %18, %19 : vector<24x128xf32>
    %21 = math.sqrt %20 : vector<24x128xf32>
    %22 = arith.truncf %21 : vector<24x128xf32> to vector<24x128xbf16>
    %c0_17 = arith.constant 0 : index
    %c0_18 = arith.constant 0 : index
    %23 = vector.load %arg3[%c0_17, %c0_18] : memref<128x128xbf16, #tpu.memory_space<vmem>>, vector<128x128xbf16>
    %cst_19 = arith.constant dense<0.000000e+00> : vector<24x128xf32>
    %24 = tpu.matmul %22, %23, %cst_19 {dimension_numbers = #tpu.dot_dimension_numbers<[1], [0], [0], [1], [0, 0, 1, 1], [], []>} : vector<24x128xbf16>, vector<128x128xbf16>, vector<24x128xf32> -> vector<24x128xf32>
    %cst_20 = arith.constant 9.99999974E-6 : f32
    %25 = vector.broadcast %cst_20 : f32 to vector<24x128xf32>
    %26 = arith.maximumf %24, %25 : vector<24x128xf32>
    %27 = math.log %26 : vector<24x128xf32>
    %c0_21 = arith.constant 0 : index
    %c0_22 = arith.constant 0 : index
    %28 = vector.load %arg4[%c0_21, %c0_22] : memref<24x128xf32, #tpu.memory_space<vmem>>, vector<24x128xf32>
    tpu.vector_store %arg4[%c0_21, %c0_22], %27 {strides = array<i32>} : memref<24x128xf32, #tpu.memory_space<vmem>>, vector<24x128xf32>,
    return
  }
  func.func @transform_0(%arg0: i32) -> (i32, i32, i32) {
    %c0_i32 = arith.constant 0 : i32
    %c0_i32_0 = arith.constant 0 : i32
    %c0_i32_1 = arith.constant 0 : i32
    return %arg0, %c0_i32, %c0_i32_0 : i32, i32, i32
  }
  func.func @transform_1(%arg0: i32) -> (i32, i32) {
    %c0_i32 = arith.constant 0 : i32
    %c0_i32_0 = arith.constant 0 : i32
    %c0_i32_1 = arith.constant 0 : i32
    return %c0_i32, %c0_i32_0 : i32, i32
  }
  func.func @transform_2(%arg0: i32) -> (i32, i32) {
    %c0_i32 = arith.constant 0 : i32
    %c0_i32_0 = arith.constant 0 : i32
    %c0_i32_1 = arith.constant 0 : i32
    return %c0_i32, %c0_i32_0 : i32, i32
  }
  func.func @transform_3(%arg0: i32) -> (i32, i32) {
    %c0_i32 = arith.constant 0 : i32
    %c0_i32_0 = arith.constant 0 : i32
    return %arg0, %c0_i32 : i32, i32
  }
}

</mosaic_0001>

<llo_original>
// kernel: tpu_custom_call.1
$region0: #{tpu_custom_call.1}
  #allocation0 [shape = 'u32[]', space=smem, size = 0x4, offset = 0x4, fixed_abs, tag = 'smem constant byte address 0x4 - core index']
  #allocation1 [shape = 'u32[144,128]{1,0:T(1,128)}', space=vmem, size = 0x12000, scoped, tag = 'internal scratch']
  #allocation2 [shape = 'f32[24,256]{1,0:T(8,128)}', space=vmem, size = 0x6000, scoped, tag = 'scratch operand']
  %s0 = inlined_call_operand.hbm [shape: f32[2,32,64], index: 0, kind: input, shape index: {}]
  %s1 = inlined_call_operand.hbm [shape: bf16[256,256], index: 1, kind: input, shape index: {}]
  %s2 = inlined_call_operand.hbm [shape: bf16[128,128], index: 2, kind: input, shape index: {}]
  %s3 = inlined_call_operand.hbm [shape: f32[48,128], index: 3, kind: output, shape index: {}]
  %s4 = sld [smem:[#allocation0]]
  $region57: #{tpu_custom_call.1} parent=0
    _
  %s6 = ssub.s32 1, %s4
  %s7 = scalar_select 0, %s6, %s4
  $region1: #{tpu_custom_call.1} parent=0
    #allocation3 [shape = 'u8[32768]{0}', space=vmem, size = 0x8000, scoped, tag = 'input window, operand 0']
    #allocation4 [shape = 's32[2]{0}', space=sflag, size = 0x8, scoped, tag = 'scoped memory for tpu_custom_call.1']
    #allocation5 [shape = 's32[2]{0}', space=sflag, size = 0x8, scoped, tag = 'scoped memory for tpu_custom_call.1']
    #allocation6 [shape = 'u8[131072]{0}', space=vmem, size = 0x20000, scoped, tag = 'input window, operand 1, single buffered']
    #allocation7 [shape = 's32[1]{0}', space=sflag, size = 0x4, scoped, tag = 'scoped memory for tpu_custom_call.1']
    #allocation8 [shape = 'u8[32768]{0}', space=vmem, size = 0x8000, scoped, tag = 'input window, operand 2, single buffered']
    #allocation9 [shape = 'u8[24576]{0}', space=vmem, size = 0x6000, scoped, tag = 'output window, operand 0']
    %8 = vsyncpa [#allocation4], 0
    %s9 = scalar_lea.sflag [#allocation4], 1
    %10 = vsyncpa %s9, 0
    %11 = vsyncpa [#allocation7], 0
    %12 = vsyncpa [#allocation5], 0
    %s13 = scalar_lea.sflag [#allocation5], 1
    %14 = vsyncpa %s13, 0
    loop: start=0, step=1, limit=4
    $region2: #{tpu_custom_call.1} parent=1 // loop_pre_header
      _
    $region3: #{tpu_custom_call.1} parent=1 // loop_header
      %s16 = sphi 0, %s20
      %p17 = scmp.ge.s32.totalorder %s16, 4
      %s26 = sphi 0, %s28
      %s29 = sphi 0, %s26
      %s30 = sphi 0, %s29
      %s46 = sphi 0, %s30
      %s50 = sphi 0, %s50
      %s52 = sphi 0, %s50
      %s53 = sphi 0, %s52
      %s67 = sphi 0, %s53
      %s71 = sphi 0, %s71
      %s73 = sphi 0, %s71
      %s74 = sphi 0, %s73
      %s88 = sphi 0, %s74
      %s94 = sphi 0, %s96
      %s97 = sphi 0, %s94
      %s98 = sphi 0, %s97
      %s114 = sphi 0, %s98
    $region4: #{tpu_custom_call.1} parent=1 // loop_header_branch
      %19 = sbr.rel (%p17) target = $region8
    $region5: #{tpu_custom_call.1} parent=1 // loop_body
      %s21 = ssub.s32 %s16, 1
      %s22 = ssub.s32 %s16, 2
      %s23 = sadd.s32 %s16, 1
      %s24 = ssub.s32 %s16, %s23
      %p25 = scmp.eq.s32.totalorder %s24, 0
      %s27 = sadd.s32 %s26, 1
      %s28 = scalar_select %p25, %s26, %s27
      %p31 = pneg %p25
      %p32 = scmp.eq.s32.totalorder %s16, 1
      %p33 = por %p31, %p32
      %p34 = scmp.ne.s32.totalorder %s26, %s29
      %p35 = scmp.eq.s32.totalorder %s16, 0
      %p36 = por %p34, %p35
      %p37 = scmp.ne.s32.totalorder %s26, %s29
      %p38 = scmp.eq.s32.totalorder %s21, 1
      %p39 = por %p37, %p38
      %p40 = scmp.ne.s32.totalorder %s29, %s30
      %p41 = scmp.eq.s32.totalorder %s21, 0
      %p42 = por %p40, %p41
      %p43 = scmp.ne.s32.totalorder %s29, %s30
      %p44 = scmp.eq.s32.totalorder %s22, 1
      %p45 = por %p43, %p44
      %p47 = scmp.ne.s32.totalorder %s30, %s46
      %p48 = scmp.eq.s32.totalorder %s22, 0
      %p49 = por %p47, %p48
      %s51 = sadd.s32 %s50, 1
      %p54 = scmp.eq.s32.totalorder %s16, 1
      %p55 = scmp.ne.s32.totalorder %s50, %s52
      %p56 = scmp.eq.s32.totalorder %s16, 0
      %p57 = por %p55, %p56
      %p58 = scmp.ne.s32.totalorder %s50, %s52
      %p59 = scmp.eq.s32.totalorder %s21, 1
      %p60 = por %p58, %p59
      %p61 = scmp.ne.s32.totalorder %s52, %s53
      %p62 = scmp.eq.s32.totalorder %s21, 0
      %p63 = por %p61, %p62
      %p64 = scmp.ne.s32.totalorder %s52, %s53
      %p65 = scmp.eq.s32.totalorder %s22, 1
      %p66 = por %p64, %p65
      %p68 = scmp.ne.s32.totalorder %s53, %s67
      %p69 = scmp.eq.s32.totalorder %s22, 0
      %p70 = por %p68, %p69
      %s72 = sadd.s32 %s71, 1
      %p75 = scmp.eq.s32.totalorder %s16, 1
      %p76 = scmp.ne.s32.totalorder %s71, %s73
      %p77 = scmp.eq.s32.totalorder %s16, 0
      %p78 = por %p76, %p77
      %p79 = scmp.ne.s32.totalorder %s71, %s73
      %p80 = scmp.eq.s32.totalorder %s21, 1
      %p81 = por %p79, %p80
      %p82 = scmp.ne.s32.totalorder %s73, %s74
      %p83 = scmp.eq.s32.totalorder %s21, 0
      %p84 = por %p82, %p83
      %p85 = scmp.ne.s32.totalorder %s73, %s74
      %p86 = scmp.eq.s32.totalorder %s22, 1
      %p87 = por %p85, %p86
      %p89 = scmp.ne.s32.totalorder %s74, %s88
      %p90 = scmp.eq.s32.totalorder %s22, 0
      %p91 = por %p89, %p90
      %s92 = ssub.s32 %s16, %s23
      %p93 = scmp.eq.s32.totalorder %s92, 0
      %s95 = sadd.s32 %s94, 1
      %s96 = scalar_select %p93, %s94, %s95
      %p99 = pneg %p93
      %p100 = scmp.eq.s32.totalorder %s16, 1
      %p101 = por %p99, %p100
      %p102 = scmp.ne.s32.totalorder %s94, %s97
      %p103 = scmp.eq.s32.totalorder %s16, 0
      %p104 = por %p102, %p103
      %p105 = scmp.ne.s32.totalorder %s94, %s97
      %p106 = scmp.eq.s32.totalorder %s21, 1
      %p107 = por %p105, %p106
      %p108 = scmp.ne.s32.totalorder %s97, %s98
      %p109 = scmp.eq.s32.totalorder %s21, 0
      %p110 = por %p108, %p109
      %p111 = scmp.ne.s32.totalorder %s97, %s98
      %p112 = scmp.eq.s32.totalorder %s22, 1
      %p113 = por %p111, %p112
      %p115 = scmp.ne.s32.totalorder %s98, %s114
      %p116 = scmp.eq.s32.totalorder %s22, 0
      %p117 = por %p115, %p116
      %p118 = scmp.le.s32.totalorder 1, %s16
      %p119 = scmp.lt.s32.totalorder %s16, 3
      %p120 = pnand %p118, %p119
      %p121 = pneg %p120
      // Predicated region
      $region9: #{tpu_custom_call.1} parent=5 // pred_check
        _
      $region10: #{tpu_custom_call.1} parent=5 // pred_check_branch
        %123 = sbr.rel (%p120) target = $region12
      $region11: #{tpu_custom_call.1} parent=5 // pred_region
        %s124 = ssub.s32 %s16, 1
        // Predicated region
        $region13: #{tpu_custom_call.1} parent=11 // pred_check
          %p125 = pneg %p63
        $region14: #{tpu_custom_call.1} parent=11 // pred_check_branch
          %127 = sbr.rel (%p125) target = $region16
        $region15: #{tpu_custom_call.1} parent=11 // pred_region
          %s129 = ssub.s32 4096, 4096
          %130 = vsyncadd [#allocation7], %s129
          %s131 = sshll.u32 [#allocation6], 4
          %s132 = int_to_ptr.vmem [resolvable:$true] %s131
          %137 = dma.hbm_to_vmem [thread:$0]  %s1, 4096, %s132, [#allocation7], 128, 128, 8
        $region16: #{tpu_custom_call.1} parent=11 // pred_fallthru
          _
        // Predicated region
        $region17: #{tpu_custom_call.1} parent=11 // pred_check
          %p138 = pneg %p84
        $region18: #{tpu_custom_call.1} parent=11 // pred_check_branch
          %140 = sbr.rel (%p138) target = $region20
        $region19: #{tpu_custom_call.1} parent=11 // pred_region
          %s142 = ssub.s32 1024, 1024
          %143 = vsyncadd [#allocation7], %s142
          %s144 = sshll.u32 [#allocation8], 4
          %s145 = int_to_ptr.vmem [resolvable:$true] %s144
          %150 = dma.hbm_to_vmem [thread:$0]  %s2, 1024, %s145, [#allocation7], 64, 64, 4
        $region20: #{tpu_custom_call.1} parent=11 // pred_fallthru
          _
      $region12: #{tpu_custom_call.1} parent=5 // pred_fallthru
        _
      %p151 = scmp.lt.s32.totalorder %s16, 2
      // Predicated region
      $region21: #{tpu_custom_call.1} parent=5 // pred_check
        %p152 = pneg %p151
      $region22: #{tpu_custom_call.1} parent=5 // pred_check_branch
        %154 = sbr.rel (%p152) target = $region24
      $region23: #{tpu_custom_call.1} parent=5 // pred_region
        // Predicated region
        $region25: #{tpu_custom_call.1} parent=23 // pred_check
          %p155 = pneg %p36
        $region26: #{tpu_custom_call.1} parent=23 // pred_check_branch
          %157 = sbr.rel (%p155) target = $region28
        $region27: #{tpu_custom_call.1} parent=23 // pred_region
          %s158 = sand.u32 %s26, 1
          %s159 = scalar_lea.sflag [#allocation4], %s158
          %s160 = sand.u32 %s26, 1
          %s161 = smul.addr %s160, 32
          %s162 = scalar_lea.vmem [#allocation3], %s161
          %s164 = ssub.s32 512, 512
          %165 = vsyncadd %s159, %s164
          %s166 = smul.addr %s16, 4
          %s167 = smul.addr %s166, 128
          %s168 = scalar_lea.hbm %s0, %s167
          %s169 = sshll.u32 %s162, 4
          %s170 = int_to_ptr.vmem [resolvable:$true] %s169
          %175 = dma.hbm_to_vmem [thread:$0]  %s168, 512, %s170, %s159, 128, 128, 8
        $region28: #{tpu_custom_call.1} parent=23 // pred_fallthru
          _
      $region24: #{tpu_custom_call.1} parent=5 // pred_fallthru
        _
      %p176 = scmp.le.s32.totalorder 1, %s16
      %p177 = scmp.lt.s32.totalorder %s16, 3
      %p178 = pnand %p176, %p177
      %p179 = pneg %p178
      // Predicated region
      $region29: #{tpu_custom_call.1} parent=5 // pred_check
        _
      $region30: #{tpu_custom_call.1} parent=5 // pred_check_branch
        %181 = sbr.rel (%p178) target = $region32
      $region31: #{tpu_custom_call.1} parent=5 // pred_region
        %s182 = ssub.s32 %s16, 1
        %s183 = sand.u32 %s29, 1
        %s184 = scalar_lea.sflag [#allocation4], %s183
        %s185 = sand.u32 %s29, 1
        %s186 = smul.addr %s185, 32
        %s187 = scalar_lea.vmem [#allocation3], %s186
        // Predicated region
        $region33: #{tpu_custom_call.1} parent=31 // pred_check
          %p188 = pneg %p42
        $region34: #{tpu_custom_call.1} parent=31 // pred_check_branch
          %190 = sbr.rel (%p188) target = $region36
        $region35: #{tpu_custom_call.1} parent=31 // pred_region
          %191 = dma.done %s184, 512
        $region36: #{tpu_custom_call.1} parent=31 // pred_fallthru
          _
        // Predicated region
        $region37: #{tpu_custom_call.1} parent=31 // pred_check
          %p192 = pneg %p63
        $region38: #{tpu_custom_call.1} parent=31 // pred_check_branch
          %194 = sbr.rel (%p192) target = $region40
        $region39: #{tpu_custom_call.1} parent=31 // pred_region
          %195 = dma.done [#allocation7], 4096
        $region40: #{tpu_custom_call.1} parent=31 // pred_fallthru
          _
        // Predicated region
        $region41: #{tpu_custom_call.1} parent=31 // pred_check
          %p196 = pneg %p84
        $region42: #{tpu_custom_call.1} parent=31 // pred_check_branch
          %198 = sbr.rel (%p196) target = $region44
        $region43: #{tpu_custom_call.1} parent=31 // pred_region
          %199 = dma.done [#allocation7], 1024
        $region44: #{tpu_custom_call.1} parent=31 // pred_fallthru
          _
        %s200 = sand.u32 %s29, 1
        %s201 = scalar_lea.sflag [#allocation4], %s200
        %s202 = sand.u32 %s29, 1
        %s203 = smul.addr %s202, 32
        %s204 = scalar_lea.vmem [#allocation3], %s203
        %p205 = pneg %p42
        %p206 = pneg %p39
        %p207 = pneg %p63
        %p208 = pneg %p60
        %p209 = pneg %p84
        %p210 = pneg %p81
        %p211 = pneg %p110
        %p212 = pneg %p107
        %s213 = sand.u32 %s97, 1
        %s214 = scalar_lea.sflag [#allocation5], %s213
        %s215 = sand.u32 %s97, 1
        %s216 = smul.addr %s215, 24
        %s217 = scalar_lea.vmem [#allocation9], %s216
        %s218 = smul.u32 3, %s21
        %v220 = vld [vmem:[%s187] sm:$0xff]
        %v221 = vld [vmem:[%s187 + $0x8] sm:$0xff]
        %v222 = vld [vmem:[%s187 + $0x10] sm:$0xff]
        %vm223 = vcmask 523264
        %224 = vst.msk [vmem:[#allocation2] sm:$0xff] %vm223, %v220
        %225 = vst.msk [vmem:[#allocation2 + $0x10] sm:$0xff] %vm223, %v221
        %226 = vst.msk [vmem:[#allocation2 + $0x20] sm:$0xff] %vm223, %v222
        %v227 = vld [vmem:[%s187 + $0x1] sm:$0xff]
        %v228 = vld [vmem:[%s187 + $0x9] sm:$0xff]
        %v229 = vld [vmem:[%s187 + $0x11] sm:$0xff]
        %233 = vrot.lane.b32.xlu0 %v227, 64
        %v234 = vpop.permute.xlu0 %233
        %235 = vrot.lane.b32.xlu0 %v228, 64
        %v236 = vpop.permute.xlu0 %235
        %237 = vrot.lane.b32.xlu0 %v229, 64
        %v238 = vpop.permute.xlu0 %237
        %vm242 = vcmask 1048064
        %243 = vst.msk [vmem:[#allocation2] sm:$0xff] %vm242, %v234
        %244 = vst.msk [vmem:[#allocation2 + $0x10] sm:$0xff] %vm242, %v236
        %245 = vst.msk [vmem:[#allocation2 + $0x20] sm:$0xff] %vm242, %v238
        %v246 = vld [vmem:[%s187 + $0x2] sm:$0xff]
        %v247 = vld [vmem:[%s187 + $0xa] sm:$0xff]
        %v248 = vld [vmem:[%s187 + $0x12] sm:$0xff]
        %249 = vst.msk [vmem:[#allocation2 + $0x8] sm:$0xff] %vm223, %v246
        %250 = vst.msk [vmem:[#allocation2 + $0x18] sm:$0xff] %vm223, %v247
        %251 = vst.msk [vmem:[#allocation2 + $0x28] sm:$0xff] %vm223, %v248
        %v252 = vld [vmem:[%s187 + $0x3] sm:$0xff]
        %v253 = vld [vmem:[%s187 + $0xb] sm:$0xff]
        %v254 = vld [vmem:[%s187 + $0x13] sm:$0xff]
        %258 = vrot.lane.b32.xlu0 %v252, 64
        %v259 = vpop.permute.xlu0 %258
        %260 = vrot.lane.b32.xlu0 %v253, 64
        %v261 = vpop.permute.xlu0 %260
        %262 = vrot.lane.b32.xlu0 %v254, 64
        %v263 = vpop.permute.xlu0 %262
        %267 = vst.msk [vmem:[#allocation2 + $0x8] sm:$0xff] %vm242, %v259
        %268 = vst.msk [vmem:[#allocation2 + $0x18] sm:$0xff] %vm242, %v261
        %269 = vst.msk [vmem:[#allocation2 + $0x28] sm:$0xff] %vm242, %v263
        %v270 = vld [vmem:[#allocation2] sm:$0xff]
        %v271 = vld [vmem:[#allocation2 + $0x8] sm:$0xff]
        %v272 = vld [vmem:[#allocation2 + $0x10] sm:$0xff]
        %v273 = vld [vmem:[#allocation2 + $0x18] sm:$0xff]
        %v274 = vld [vmem:[#allocation2 + $0x20] sm:$0xff]
        %v275 = vld [vmem:[#allocation2 + $0x28] sm:$0xff]
        %v276 = vpack.c.bf16 %v272, %v270
        %v277 = vpack.c.bf16 %v273, %v271
        %v278 = vpack.c.bf16 %v274, %v274
        %v279 = vpack.c.bf16 %v275, %v275
        %v280 = vld [vmem:[#allocation6] sm:$0xff]
        %v281 = vld [vmem:[#allocation6 + $0x8] sm:$0xff]
        %v282 = vld [vmem:[#allocation6 + $0x10] sm:$0xff]
        %v283 = vld [vmem:[#allocation6 + $0x18] sm:$0xff]
        %v284 = vld [vmem:[#allocation6 + $0x20] sm:$0xff]
        %v285 = vld [vmem:[#allocation6 + $0x28] sm:$0xff]
        %v286 = vld [vmem:[#allocation6 + $0x30] sm:$0xff]
        %v287 = vld [vmem:[#allocation6 + $0x38] sm:$0xff]
        %v288 = vld [vmem:[#allocation6 + $0x40] sm:$0xff]
        %v289 = vld [vmem:[#allocation6 + $0x48] sm:$0xff]
        %v290 = vld [vmem:[#allocation6 + $0x50] sm:$0xff]
        %v291 = vld [vmem:[#allocation6 + $0x58] sm:$0xff]
        %v292 = vld [vmem:[#allocation6 + $0x60] sm:$0xff]
        %v293 = vld [vmem:[#allocation6 + $0x68] sm:$0xff]
        %v294 = vld [vmem:[#allocation6 + $0x70] sm:$0xff]
        %v295 = vld [vmem:[#allocation6 + $0x78] sm:$0xff]
        %v296 = vld [vmem:[#allocation6 + $0x80] sm:$0xff]
        %v297 = vld [vmem:[#allocation6 + $0x88] sm:$0xff]
        %v298 = vld [vmem:[#allocation6 + $0x90] sm:$0xff]
        %v299 = vld [vmem:[#allocation6 + $0x98] sm:$0xff]
        %v300 = vld [vmem:[#allocation6 + $0xa0] sm:$0xff]
        %v301 = vld [vmem:[#allocation6 + $0xa8] sm:$0xff]
        %v302 = vld [vmem:[#allocation6 + $0xb0] sm:$0xff]
        %v303 = vld [vmem:[#allocation6 + $0xb8] sm:$0xff]
        %v304 = vld [vmem:[#allocation6 + $0xc0] sm:$0xff]
        %v305 = vld [vmem:[#allocation6 + $0xc8] sm:$0xff]
        %v306 = vld [vmem:[#allocation6 + $0xd0] sm:$0xff]
        %v307 = vld [vmem:[#allocation6 + $0xd8] sm:$0xff]
        %v308 = vld [vmem:[#allocation6 + $0xe0] sm:$0xff]
        %v309 = vld [vmem:[#allocation6 + $0xe8] sm:$0xff]
        %v310 = vld [vmem:[#allocation6 + $0xf0] sm:$0xff]
        %v311 = vld [vmem:[#allocation6 + $0xf8] sm:$0xff]
        %v344 = vunpack.c.l.b16 %v280
        %v345 = vunpack.c.h.b16 %v280
        %v346 = vunpack.c.l.b16 %v281
        %v347 = vunpack.c.h.b16 %v281
        %v348 = vunpack.c.l.b16 %v282
        %v349 = vunpack.c.h.b16 %v282
        %v350 = vunpack.c.l.b16 %v283
        %v351 = vunpack.c.h.b16 %v283
        %v352 = vunpack.c.l.b16 %v284
        %v353 = vunpack.c.h.b16 %v284
        %v354 = vunpack.c.l.b16 %v285
        %v355 = vunpack.c.h.b16 %v285
        %v356 = vunpack.c.l.b16 %v286
        %v357 = vunpack.c.h.b16 %v286
        %v358 = vunpack.c.l.b16 %v287
        %v359 = vunpack.c.h.b16 %v287
        %v360 = vunpack.c.l.b16 %v288
        %v361 = vunpack.c.h.b16 %v288
        %v362 = vunpack.c.l.b16 %v289
        %v363 = vunpack.c.h.b16 %v289
        %v364 = vunpack.c.l.b16 %v290
        %v365 = vunpack.c.h.b16 %v290
        %v366 = vunpack.c.l.b16 %v291
        %v367 = vunpack.c.h.b16 %v291
        %v368 = vunpack.c.l.b16 %v292
        %v369 = vunpack.c.h.b16 %v292
        %v370 = vunpack.c.l.b16 %v293
        %v371 = vunpack.c.h.b16 %v293
        %v372 = vunpack.c.l.b16 %v294
        %v373 = vunpack.c.h.b16 %v294
        %v374 = vunpack.c.l.b16 %v295
        %v375 = vunpack.c.h.b16 %v295
        %v376 = vunpack.c.l.b16 %v296
        %v377 = vunpack.c.h.b16 %v296
        %v378 = vunpack.c.l.b16 %v297
        %v379 = vunpack.c.h.b16 %v297
        %v380 = vunpack.c.l.b16 %v298
        %v381 = vunpack.c.h.b16 %v298
        %v382 = vunpack.c.l.b16 %v299
        %v383 = vunpack.c.h.b16 %v299
        %v384 = vunpack.c.l.b16 %v300
        %v385 = vunpack.c.h.b16 %v300
        %v386 = vunpack.c.l.b16 %v301
        %v387 = vunpack.c.h.b16 %v301
        %v388 = vunpack.c.l.b16 %v302
        %v389 = vunpack.c.h.b16 %v302
        %v390 = vunpack.c.l.b16 %v303
        %v391 = vunpack.c.h.b16 %v303
        %v392 = vunpack.c.l.b16 %v304
        %v393 = vunpack.c.h.b16 %v304
        %v394 = vunpack.c.l.b16 %v305
        %v395 = vunpack.c.h.b16 %v305
        %v396 = vunpack.c.l.b16 %v306
        %v397 = vunpack.c.h.b16 %v306
        %v398 = vunpack.c.l.b16 %v307
        %v399 = vunpack.c.h.b16 %v307
        %v400 = vunpack.c.l.b16 %v308
        %v401 = vunpack.c.h.b16 %v308
        %v402 = vunpack.c.l.b16 %v309
        %v403 = vunpack.c.h.b16 %v309
        %v404 = vunpack.c.l.b16 %v310
        %v405 = vunpack.c.h.b16 %v310
        %v406 = vunpack.c.l.b16 %v311
        %v407 = vunpack.c.h.b16 %v311
        %v408 = vpack.c.b16 %v346, %v344
        %v409 = vpack.c.b16 %v347, %v345
        %v410 = vpack.c.b16 %v350, %v348
        %v411 = vpack.c.b16 %v351, %v349
        %v412 = vpack.c.b16 %v354, %v352
        %v413 = vpack.c.b16 %v355, %v353
        %v414 = vpack.c.b16 %v358, %v356
        %v415 = vpack.c.b16 %v359, %v357
        %v416 = vpack.c.b16 %v362, %v360
        %v417 = vpack.c.b16 %v363, %v361
        %v418 = vpack.c.b16 %v366, %v364
        %v419 = vpack.c.b16 %v367, %v365
        %v420 = vpack.c.b16 %v370, %v368
        %v421 = vpack.c.b16 %v371, %v369
        %v422 = vpack.c.b16 %v374, %v372
        %v423 = vpack.c.b16 %v375, %v373
        %v424 = vpack.c.b16 %v378, %v376
        %v425 = vpack.c.b16 %v379, %v377
        %v426 = vpack.c.b16 %v382, %v380
        %v427 = vpack.c.b16 %v383, %v381
        %v428 = vpack.c.b16 %v386, %v384
        %v429 = vpack.c.b16 %v387, %v385
        %v430 = vpack.c.b16 %v390, %v388
        %v431 = vpack.c.b16 %v391, %v389
        %v432 = vpack.c.b16 %v394, %v392
        %v433 = vpack.c.b16 %v395, %v393
        %v434 = vpack.c.b16 %v398, %v396
        %v435 = vpack.c.b16 %v399, %v397
        %v436 = vpack.c.b16 %v402, %v400
        %v437 = vpack.c.b16 %v403, %v401
        %v438 = vpack.c.b16 %v406, %v404
        %v439 = vpack.c.b16 %v407, %v405
        %472 = vmatprep.subr.bf16.mxu0 %v409
        %473 = vmatpush1.bf16.msra.mxu0 %v408
        %474 = vmatprep.subr.bf16.mxu0 %v411
        %475 = vmatpush1.bf16.msra.mxu0 %v410
        %476 = vmatprep.subr.bf16.mxu0 %v413
        %477 = vmatpush1.bf16.msra.mxu0 %v412
        %478 = vmatprep.subr.bf16.mxu0 %v415
        %479 = vmatpush1.bf16.msra.mxu0 %v414
        %480 = vmatprep.subr.bf16.mxu0 %v417
        %481 = vmatpush1.bf16.msra.mxu0 %v416
        %482 = vmatprep.subr.bf16.mxu0 %v419
        %483 = vmatpush1.bf16.msra.mxu0 %v418
        %484 = vmatprep.subr.bf16.mxu0 %v421
        %485 = vmatpush1.bf16.msra.mxu0 %v420
        %486 = vmatprep.subr.bf16.mxu0 %v423
        %487 = vmatpush1.bf16.msra.mxu0 %v422
        %488 = vmatprep.subr.bf16.mxu0 %v425
        %489 = vmatpush1.bf16.msra.mxu0 %v424
        %490 = vmatprep.subr.bf16.mxu0 %v427
        %491 = vmatpush1.bf16.msra.mxu0 %v426
        %492 = vmatprep.subr.bf16.mxu0 %v429
        %493 = vmatpush1.bf16.msra.mxu0 %v428
        %494 = vmatprep.subr.bf16.mxu0 %v431
        %495 = vmatpush1.bf16.msra.mxu0 %v430
        %496 = vmatprep.subr.bf16.mxu0 %v433
        %497 = vmatpush1.bf16.msra.mxu0 %v432
        %498 = vmatprep.subr.bf16.mxu0 %v435
        %499 = vmatpush1.bf16.msra.mxu0 %v434
        %500 = vmatprep.subr.bf16.mxu0 %v437
        %501 = vmatpush1.bf16.msra.mxu0 %v436
        %502 = vmatprep.subr.bf16.mxu0 %v439
        %503 = vmatpush1.bf16.msra.mxu0 %v438
        %504 = vmatprep.mubr.bf16.mxu0 %v277
        %505 = vmatmul.mubr.bf16.gmra.mrb[0].mxu0 %v276
        %v506 = vpop.f32.mrb[0].mxu0
        %v507 = vadd.f32 0.0, %v506
        %v508 = vpop.f32.mrb[0].mxu0
        %v509 = vadd.f32 0.0, %v508
        %v510 = vpop.f32.mrb[0].mxu0
        %v511 = vadd.f32 0.0, %v510
        %v512 = vpop.f32.mrb[0].mxu0
        %v513 = vadd.f32 0.0, %v512
        %514 = vmatprep.mubr.bf16.mxu0 %v279
        %515 = vmatmul.mubr.bf16.gmra.mrb[0].mxu0 %v278
        %v516 = vpop.f32.mrb[0].mxu0
        %v517 = vadd.f32 0.0, %v516
        %v518 = vpop.f32.mrb[0].mxu0
        %v519 = vadd.f32 0.0, %v518
        %v520 = vpop.f32.mrb[0].mxu0
        %v521 = vpop.f32.mrb[0].mxu0
        %522 = vdwg.mxu0
        %v523 = vmul.f32 %v507, %v507
        %v524 = vmul.f32 %v511, %v511
        %v525 = vmul.f32 %v517, %v517
        %v526 = vmul.f32 %v509, %v509
        %v527 = vmul.f32 %v513, %v513
        %v528 = vmul.f32 %v519, %v519
        %v529 = vadd.f32 %v523, %v526
        %v530 = vadd.f32 %v524, %v527
        %v531 = vadd.f32 %v525, %v528
        %v532 = vrsqrt.pop %v529
        %v533 = vmul.f32 %v529, %v532
        %vm534 = vcmp.eq.f32.partialorder %v529, inf
        %v535 = vsel %vm534, %v529, %v533
        %vm536 = vcmp.eq.f32.partialorder %v529, 0.0
        %v537 = vand.u32 %v529, 2147483648
        %v538 = vsel %vm536, %v537, %v535
        %v539 = vrsqrt.pop %v530
        %v540 = vmul.f32 %v530, %v539
        %vm541 = vcmp.eq.f32.partialorder %v530, inf
        %v542 = vsel %vm541, %v530, %v540
        %vm543 = vcmp.eq.f32.partialorder %v530, 0.0
        %v544 = vand.u32 %v530, 2147483648
        %v545 = vsel %vm543, %v544, %v542
        %v546 = vrsqrt.pop %v531
        %v547 = vmul.f32 %v531, %v546
        %vm548 = vcmp.eq.f32.partialorder %v531, inf
        %v549 = vsel %vm548, %v531, %v547
        %vm550 = vcmp.eq.f32.partialorder %v531, 0.0
        %v551 = vand.u32 %v531, 2147483648
        %v552 = vsel %vm550, %v551, %v549
        %v553 = vpack.c.bf16 %v545, %v538
        %v554 = vpack.c.bf16 %v552, %v552
        %v555 = vld [vmem:[#allocation8] sm:$0xf]
        %v556 = vld [vmem:[#allocation8 + $0x4] sm:$0xf]
        %v557 = vld [vmem:[#allocation8 + $0x8] sm:$0xf]
        %v558 = vld [vmem:[#allocation8 + $0xc] sm:$0xf]
        %v559 = vld [vmem:[#allocation8 + $0x10] sm:$0xf]
        %v560 = vld [vmem:[#allocation8 + $0x14] sm:$0xf]
        %v561 = vld [vmem:[#allocation8 + $0x18] sm:$0xf]
        %v562 = vld [vmem:[#allocation8 + $0x1c] sm:$0xf]
        %v563 = vld [vmem:[#allocation8 + $0x20] sm:$0xf]
        %v564 = vld [vmem:[#allocation8 + $0x24] sm:$0xf]
        %v565 = vld [vmem:[#allocation8 + $0x28] sm:$0xf]
        %v566 = vld [vmem:[#allocation8 + $0x2c] sm:$0xf]
        %v567 = vld [vmem:[#allocation8 + $0x30] sm:$0xf]
        %v568 = vld [vmem:[#allocation8 + $0x34] sm:$0xf]
        %v569 = vld [vmem:[#allocation8 + $0x38] sm:$0xf]
        %v570 = vld [vmem:[#allocation8 + $0x3c] sm:$0xf]
        %v587 = vunpack.c.l.b16 %v555
        %v588 = vunpack.c.l.b16 %v556
        %v589 = vunpack.c.l.b16 %v557
        %v590 = vunpack.c.l.b16 %v558
        %v591 = vunpack.c.l.b16 %v559
        %v592 = vunpack.c.l.b16 %v560
        %v593 = vunpack.c.l.b16 %v561
        %v594 = vunpack.c.l.b16 %v562
        %v595 = vunpack.c.l.b16 %v563
        %v596 = vunpack.c.l.b16 %v564
        %v597 = vunpack.c.l.b16 %v565
        %v598 = vunpack.c.l.b16 %v566
        %v599 = vunpack.c.l.b16 %v567
        %v600 = vunpack.c.l.b16 %v568
        %v601 = vunpack.c.l.b16 %v569
        %v602 = vunpack.c.l.b16 %v570
        %v603 = vpack.c.b16 %v588, %v587
        %v604 = vpack.c.b16 %v590, %v589
        %v605 = vpack.c.b16 %v592, %v591
        %v606 = vpack.c.b16 %v594, %v593
        %v607 = vpack.c.b16 %v596, %v595
        %v608 = vpack.c.b16 %v598, %v597
        %v609 = vpack.c.b16 %v600, %v599
        %v610 = vpack.c.b16 %v602, %v601
        %619 = vmatprep.subr.bf16.mxu0 0
        %620 = vmatpush1.bf16.msra.mxu0 %v603
        %621 = vmatprep.subr.bf16.mxu0 0
        %622 = vmatpush1.bf16.msra.mxu0 %v604
        %623 = vmatprep.subr.bf16.mxu0 0
        %624 = vmatpush1.bf16.msra.mxu0 %v605
        %625 = vmatprep.subr.bf16.mxu0 0
        %626 = vmatpush1.bf16.msra.mxu0 %v606
        %627 = vmatprep.subr.bf16.mxu0 0
        %628 = vmatpush1.bf16.msra.mxu0 %v607
        %629 = vmatprep.subr.bf16.mxu0 0
        %630 = vmatpush1.bf16.msra.mxu0 %v608
        %631 = vmatprep.subr.bf16.mxu0 0
        %632 = vmatpush1.bf16.msra.mxu0 %v609
        %633 = vmatprep.subr.bf16.mxu0 0
        %634 = vmatpush1.bf16.msra.mxu0 %v610
        %635 = vmatprep.subr.bf16.mxu0 0
        %636 = vmatpush1.bf16.msra.mxu0 0
        %637 = vmatprep.subr.bf16.mxu0 0
        %638 = vmatpush1.bf16.msra.mxu0 0
        %639 = vmatprep.subr.bf16.mxu0 0
        %640 = vmatpush1.bf16.msra.mxu0 0
        %641 = vmatprep.subr.bf16.mxu0 0
        %642 = vmatpush1.bf16.msra.mxu0 0
        %643 = vmatprep.subr.bf16.mxu0 0
        %644 = vmatpush1.bf16.msra.mxu0 0
        %645 = vmatprep.subr.bf16.mxu0 0
        %646 = vmatpush1.bf16.msra.mxu0 0
        %647 = vmatprep.subr.bf16.mxu0 0
        %648 = vmatpush1.bf16.msra.mxu0 0
        %649 = vmatprep.subr.bf16.mxu0 0
        %650 = vmatpush1.bf16.msra.mxu0 0
        %651 = vmatprep.mubr.bf16.mxu0 0
        %652 = vmatmul.mubr.bf16.gmra.mrb[0].mxu0 %v553
        %v653 = vpop.f32.mrb[0].mxu0
        %v654 = vadd.f32 0.0, %v653
        %v655 = vpop.f32.mrb[0].mxu0
        %v656 = vpop.f32.mrb[0].mxu0
        %v657 = vadd.f32 0.0, %v656
        %v658 = vpop.f32.mrb[0].mxu0
        %659 = vmatprep.mubr.bf16.mxu0 0
        %660 = vmatmul.mubr.bf16.gmra.mrb[0].mxu0 %v554
        %v661 = vpop.f32.mrb[0].mxu0
        %v662 = vadd.f32 0.0, %v661
        %v663 = vpop.f32.mrb[0].mxu0
        %v664 = vpop.f32.mrb[0].mxu0
        %v665 = vpop.f32.mrb[0].mxu0
        %666 = vdwg.mxu0
        %v667 = vmax.f32 %v654, 1e-05
        %v668 = vmax.f32 %v657, 1e-05
        %v669 = vmax.f32 %v662, 1e-05
        %v670 = vlog2.pop %v667
        %v671 = vmul.f32 %v670, 0.6931472
        %v672 = vlog2.pop %v668
        %v673 = vmul.f32 %v672, 0.6931472
        %v674 = vlog2.pop %v669
        %v675 = vmul.f32 %v674, 0.6931472
        %676 = vst [vmem:[%s217] sm:$0xff] %v671
        %677 = vst [vmem:[%s217 + $0x8] sm:$0xff] %v673
        %678 = vst [vmem:[%s217 + $0x10] sm:$0xff] %v675
        %s679 = sand.u32 %s97, 1
        %s680 = scalar_lea.sflag [#allocation5], %s679
        %s681 = sand.u32 %s97, 1
        %s682 = smul.addr %s681, 24
        %s683 = scalar_lea.vmem [#allocation9], %s682
        // Predicated region
        $region45: #{tpu_custom_call.1} parent=31 // pred_check
          %p684 = pneg %p107
        $region46: #{tpu_custom_call.1} parent=31 // pred_check_branch
          %686 = sbr.rel (%p684) target = $region48
        $region47: #{tpu_custom_call.1} parent=31 // pred_region
          %s687 = smul.u32 3, %s21
          %s689 = ssub.s32 384, 384
          %690 = vsyncadd %s680, %s689
          %s691 = smul.addr %s687, 128
          %s692 = scalar_lea.hbm %s3, %s691
          %s693 = sshll.u32 %s683, 4
          %s694 = int_to_ptr.vmem [resolvable:$true] %s693
          %699 = dma.vmem_to_hbm [thread:$0]  %s694, 384, %s692, %s680, 128, 128, 8
        $region48: #{tpu_custom_call.1} parent=31 // pred_fallthru
          _
      $region32: #{tpu_custom_call.1} parent=5 // pred_fallthru
        _
      %p700 = scmp.le.s32.totalorder 2, %s16
      // Predicated region
      $region49: #{tpu_custom_call.1} parent=5 // pred_check
        %p701 = pneg %p700
      $region50: #{tpu_custom_call.1} parent=5 // pred_check_branch
        %703 = sbr.rel (%p701) target = $region52
      $region51: #{tpu_custom_call.1} parent=5 // pred_region
        %s704 = ssub.s32 %s16, 2
        // Predicated region
        $region53: #{tpu_custom_call.1} parent=51 // pred_check
          %p705 = pneg %p113
        $region54: #{tpu_custom_call.1} parent=51 // pred_check_branch
          %707 = sbr.rel (%p705) target = $region56
        $region55: #{tpu_custom_call.1} parent=51 // pred_region
          %s708 = sand.u32 %s98, 1
          %s709 = scalar_lea.sflag [#allocation5], %s708
          %s710 = sand.u32 %s98, 1
          %s711 = smul.addr %s710, 24
          %s712 = scalar_lea.vmem [#allocation9], %s711
          %713 = dma.done %s709, 384
        $region56: #{tpu_custom_call.1} parent=51 // pred_fallthru
          _
      $region52: #{tpu_custom_call.1} parent=5 // pred_fallthru
        _
    $region6: #{tpu_custom_call.1} parent=1 // loop_footer
      %s20 = sadd.s32 1, %s16
    $region7: #{tpu_custom_call.1} parent=1 // loop_footer_branch
      %15 = sbr.rel target = $region3
    $region8: #{tpu_custom_call.1} parent=1 // loop_exit
      _
    %714 = vsyncpa [#allocation4], 1
    %s715 = scalar_lea.sflag [#allocation4], 1
    %716 = vsyncpa %s715, 1
    %717 = vsyncpa [#allocation7], 1
    %718 = vsyncpa [#allocation5], 1
    %s719 = scalar_lea.sflag [#allocation5], 1
    %720 = vsyncpa %s719, 1

</llo_original>
